<compile_context>
chip_gen: v7x
topology: tpu7x:2x2x1
jax: 0.10.0
libtpu: 0.0.40
codegen_flags: <defaults>
</compile_context>

<pallas_src>
import functools
import math

import jax
import jax.numpy as jnp
from jax import lax
from jax.experimental import pallas as pl
from jax.experimental.pallas import tpu as pltpu

EPS = 1e-5


def _round_up(x, m):
    return (x + m - 1) // m * m


# ---------------------------------------------------------------------------
# Kernel 1: stats-only pass.  Per (sample, spatial-chunk) grid step, compute
# y = W_stk @ x_chunk in lane-sub-chunks (bounds vreg pressure) and emit per-row
# partial sums / sums-of-squares.  No bias (it cancels in training-mode BN).
#   x_ref : (1, Cin, BM)     w_ref : (R, Cin)     s_ref : (1, 1, R, 2)
# ---------------------------------------------------------------------------
def _stats_kernel(x_ref, w_ref, s_ref, *, chunk):
    w = w_ref[...]                                   # (R, Cin)
    r = w.shape[0]
    bm = x_ref.shape[2]
    sums = jnp.zeros((r, 1), jnp.float32)
    sqs = jnp.zeros((r, 1), jnp.float32)
    for t in range(bm // chunk):                     # static unroll over lane chunks
        xc = x_ref[0, :, t * chunk:(t + 1) * chunk]  # (Cin, chunk) lane-dense load
        y = jnp.dot(w, xc, preferred_element_type=jnp.float32)   # (R, chunk)
        sums = sums + jnp.sum(y, axis=1, keepdims=True)
        sqs = sqs + jnp.sum(y * y, axis=1, keepdims=True)
    s_ref[0, 0] = jnp.concatenate([sums, sqs], axis=1)           # (R, 2) tiny store


# ---------------------------------------------------------------------------
# Kernel 2: recompute the deconv matmul and apply the fused BatchNorm
# scale/shift in one pass; output block is lane-dense (R, BM).
#   x_ref : (1, Cin, BM)   w_ref : (R, Cin)   sc/sh : (R, 1)   o_ref : (1, R, BM)
# ---------------------------------------------------------------------------
def _apply_kernel(x_ref, w_ref, sc_ref, sh_ref, o_ref):
    y = jnp.dot(w_ref[...], x_ref[0], preferred_element_type=jnp.float32)  # (R, BM)
    o_ref[0] = y * sc_ref[...] + sh_ref[...]


def transposed_conv2d_forward(x_nchw, weight, bias, gamma, beta, *, stride=2,
                              block_m=1024):
    """ConvTranspose2d(stride=2, kernel=stride) + BatchNorm2d (training-mode stats).

    x_nchw : (N, Cin, H, W) f32
    weight : (Cin, Cout, kH, kW) f32   (PyTorch ConvTranspose2d layout)
    bias   : (Cout,) f32   (mathematically cancelled by training-mode BatchNorm)
    gamma, beta : (Cout,) f32
    returns: (N, Cout, H*stride, W*stride) f32
    """
    del bias  # exactly cancelled by batch-statistics BatchNorm; kept for interface.

    N, Cin, H, W = x_nchw.shape
    Cin_w, Cout, kH, kW = weight.shape
    assert Cin == Cin_w
    # Non-overlapping case only (each output pixel comes from exactly one tap).
    assert kH == stride and kW == stride

    Hout, Wout = H * stride, W * stride
    HW = H * W
    R = kH * kW * Cout

    # ---- tile sizes (lane-dense, multiple of 128) ----
    bm = _round_up(min(int(block_m), _round_up(HW, 128)), 128)
    HWp = _round_up(HW, bm)
    G = HWp // bm
    chunk = math.gcd(bm, 512)                 # stats reduction sub-chunk (vreg cap)

    # ---- layout prep: free reshape of x (no HBM transpose), pad spatial axis ----
    x3 = x_nchw.reshape(N, Cin, HW)
    if HWp != HW:
        x3 = jnp.pad(x3, ((0, 0), (0, 0), (0, HWp - HW)))   # zero cols -> Wx == 0

    # Stacked weight: rows ordered (kh, kw, c);  w_stk[r, ci] = W[ci, c, kh, kw].
    w_stk = jnp.transpose(weight, (2, 3, 1, 0)).reshape(R, Cin)

    grid = (N, G)
    dim_sem = pltpu.CompilerParams(dimension_semantics=("parallel", "parallel"))

    # ---- pass 1: per-step partial sums / sums-of-squares of Wx ----
    stats = pl.pallas_call(
        functools.partial(_stats_kernel, chunk=chunk),
        out_shape=jax.ShapeDtypeStruct((N, G, R, 2), jnp.float32),
        grid=grid,
        in_specs=[
            pl.BlockSpec((1, Cin, bm), lambda n, g: (n, 0, g)),
            pl.BlockSpec((R, Cin), lambda n, g: (0, 0)),
        ],
        out_specs=pl.BlockSpec((1, 1, R, 2), lambda n, g: (n, g, 0, 0)),
        compiler_params=dim_sem,
    )(x3, w_stk)

    # ---- finish BN statistics on the tiny partial-sum tensor (pure JAX) ----
    count = N * Hout * Wout
    s_tot = jnp.sum(stats, axis=(0, 1))                          # (R, 2)
    sum_c = jnp.sum(s_tot[:, 0].reshape(kH * kW, Cout), axis=0)  # per-channel sum(Wx)
    sq_c = jnp.sum(s_tot[:, 1].reshape(kH * kW, Cout), axis=0)   # per-channel sum(Wx^2)
    mean = sum_c / count
    var = sq_c / count - mean * mean          # Wx is bias-free -> benign cancellation
    scale_c = gamma * lax.rsqrt(var + EPS)
    shift_c = beta - mean * scale_c           # conv bias cancels exactly here
    scale_rows = jnp.tile(scale_c, kH * kW).reshape(R, 1)
    shift_rows = jnp.tile(shift_c, kH * kW).reshape(R, 1)

    # ---- pass 2: recompute Wx, apply scale/shift, write lane-dense (N, R, HWp) ----
    out3 = pl.pallas_call(
        _apply_kernel,
        out_shape=jax.ShapeDtypeStruct((N, R, HWp), jnp.float32),
        grid=grid,
        in_specs=[
            pl.BlockSpec((1, Cin, bm), lambda n, g: (n, 0, g)),
            pl.BlockSpec((R, Cin), lambda n, g: (0, 0)),
            pl.BlockSpec((R, 1), lambda n, g: (0, 0)),
            pl.BlockSpec((R, 1), lambda n, g: (0, 0)),
        ],
        out_specs=pl.BlockSpec((1, R, bm), lambda n, g: (n, 0, g)),
        compiler_params=dim_sem,
    )(x3, w_stk, scale_rows, shift_rows)

    # ---- single final layout fix back to NCHW (required by the PyTorch interface) ----
    # rows r = (kh, kw, c); cols m = (h, w);  out[n, c, 2h+kh, 2w+kw] = out3[n, r, m]
    out6 = out3[:, :, :HW].reshape(N, kH, kW, Cout, H, W)
    out = jnp.transpose(out6, (0, 3, 4, 1, 5, 2)).reshape(N, Cout, Hout, Wout)
    return out


# ---------------------------------------------------------------------------
# Pure-JAX reference (correctness check) — ConvTranspose2d via dilated conv + BN.
# ---------------------------------------------------------------------------
def _reference(x_nchw, weight, bias, gamma, beta, *, stride=2):
    Cin, Cout, kH, kW = weight.shape
    w_flip = weight[:, :, ::-1, ::-1]
    w_conv = jnp.transpose(w_flip, (1, 0, 2, 3))  # OIHW with O=Cout, I=Cin
    y = lax.conv_general_dilated(
        x_nchw,
        w_conv,
        window_strides=(1, 1),
        padding=[(kH - 1, kH - 1), (kW - 1, kW - 1)],
        lhs_dilation=(stride, stride),
        dimension_numbers=("NCHW", "OIHW", "NCHW"),
    )
    y = y + bias.reshape(1, Cout, 1, 1)
    mean = jnp.mean(y, axis=(0, 2, 3), keepdims=True)
    var = jnp.mean((y - mean) ** 2, axis=(0, 2, 3), keepdims=True)
    y = (y - mean) * lax.rsqrt(var + EPS)
    return y * gamma.reshape(1, Cout, 1, 1) + beta.reshape(1, Cout, 1, 1)


if __name__ == "__main__":
    key = jax.random.PRNGKey(0)
    k_x, k_w, k_b = jax.random.split(key, 3)

    N, Cin, H, W = 2, 4, 16, 16
    Cout, ksize, stride = 8, 2, 2

    x = jax.random.normal(k_x, (N, Cin, H, W), dtype=jnp.float32)
    # PyTorch ConvTranspose2d weight layout: (Cin, Cout, kH, kW)
    weight = 0.1 * jax.random.normal(k_w, (Cin, Cout, ksize, ksize), dtype=jnp.float32)
    bias = 0.1 * jax.random.normal(k_b, (Cout,), dtype=jnp.float32)
    gamma = jnp.ones((Cout,), dtype=jnp.float32)   # BatchNorm2d default affine init
    beta = jnp.zeros((Cout,), dtype=jnp.float32)

    out = transposed_conv2d_forward(x, weight, bias, gamma, beta, stride=stride)
    out = jax.block_until_ready(out)

    ref = jax.block_until_ready(_reference(x, weight, bias, gamma, beta, stride=stride))
    assert out.shape == (N, Cout, H * stride, W * stride), out.shape
    max_err = float(jnp.max(jnp.abs(out - ref)))
    assert jnp.allclose(out, ref, rtol=2e-3, atol=2e-3), max_err

    print("KERNEL_OK")
</pallas_src>

<mosaic_0001>
module attributes {stable_mosaic.version = 11 : i64} {
  func.func @_stats_kernel(%arg0: i32, %arg1: i32, %arg2: memref<1x4x256xf32, #tpu.memory_space<vmem>>, %arg3: memref<32x4xf32, #tpu.memory_space<vmem>>, %arg4: memref<1x1x32x2xf32, #tpu.memory_space<vmem>>) attributes {dimension_semantics = [#tpu.dimension_semantics<parallel>, #tpu.dimension_semantics<parallel>], iteration_bounds = array<i64: 2, 1>, scalar_prefetch = 0 : i64, scratch_operands = 0 : i64, tpu.core_type = #tpu.core_type<tc>, window_params = [{transform_indices = @transform_0, window_bounds = array<i64: 1, 4, 256>}, {pipeline_mode = #tpu.pipeline_mode<synchronous>, transform_indices = @transform_1, window_bounds = array<i64: 32, 4>}, {transform_indices = @transform_2, window_bounds = array<i64: 1, 1, 32, 2>}]} {
    %c0 = arith.constant 0 : index
    %c0_0 = arith.constant 0 : index
    %0 = vector.load %arg3[%c0, %c0_0] : memref<32x4xf32, #tpu.memory_space<vmem>>, vector<32x4xf32>
    %cst = arith.constant 0.000000e+00 : f32
    %1 = vector.broadcast %cst : f32 to vector<32x1xf32>
    %cst_1 = arith.constant 0.000000e+00 : f32
    %2 = vector.broadcast %cst_1 : f32 to vector<32x1xf32>
    %c0_2 = arith.constant 0 : index
    %c0_3 = arith.constant 0 : index
    %c0_4 = arith.constant 0 : index
    %3 = vector.load %arg2[%c0_2, %c0_3, %c0_4] : memref<1x4x256xf32, #tpu.memory_space<vmem>>, vector<1x4x256xf32>
    %4 = vector.shape_cast %3 : vector<1x4x256xf32> to vector<4x256xf32>
    %cst_5 = arith.constant dense<0.000000e+00> : vector<32x256xf32>
    %5 = tpu.matmul %0, %4, %cst_5 {dimension_numbers = #tpu.dot_dimension_numbers<[1], [0], [0], [1], [0, 0, 1, 1], [], []>} : vector<32x4xf32>, vector<4x256xf32>, vector<32x256xf32> -> vector<32x256xf32>
    %cst_6 = arith.constant dense<0.000000e+00> : vector<32xf32>
    %6 = vector.multi_reduction <add>, %5, %cst_6 [1] : vector<32x256xf32> to vector<32xf32>
    %7 = vector.shape_cast %6 : vector<32xf32> to vector<32x1xf32>
    %8 = arith.addf %1, %7 : vector<32x1xf32>
    %9 = arith.mulf %5, %5 : vector<32x256xf32>
    %cst_7 = arith.constant dense<0.000000e+00> : vector<32xf32>
    %10 = vector.multi_reduction <add>, %9, %cst_7 [1] : vector<32x256xf32> to vector<32xf32>
    %11 = vector.shape_cast %10 : vector<32xf32> to vector<32x1xf32>
    %12 = arith.addf %2, %11 : vector<32x1xf32>
    %13 = tpu.concatenate %8, %12 in 1 : vector<32x1xf32>, vector<32x1xf32> -> vector<32x2xf32>
    %c0_8 = arith.constant 0 : index
    %c0_9 = arith.constant 0 : index
    %c0_10 = arith.constant 0 : index
    %c0_11 = arith.constant 0 : index
    %14 = vector.load %arg4[%c0_8, %c0_9, %c0_10, %c0_11] : memref<1x1x32x2xf32, #tpu.memory_space<vmem>>, vector<1x1x32x2xf32>
    %15 = vector.shape_cast %14 : vector<1x1x32x2xf32> to vector<32x2xf32>
    %16 = vector.shape_cast %13 : vector<32x2xf32> to vector<1x1x32x2xf32>
    tpu.vector_store %arg4[%c0_8, %c0_9, %c0_10, %c0_11], %16 {strides = array<i32>} : memref<1x1x32x2xf32, #tpu.memory_space<vmem>>, vector<1x1x32x2xf32>,
    return
  }
  func.func @transform_0(%arg0: i32, %arg1: i32) -> (i32, i32, i32) {
    %c0_i32 = arith.constant 0 : i32
    %c0_i32_0 = arith.constant 0 : i32
    return %arg0, %c0_i32, %arg1 : i32, i32, i32
  }
  func.func @transform_1(%arg0: i32, %arg1: i32) -> (i32, i32) {
    %c0_i32 = arith.constant 0 : i32
    %c0_i32_0 = arith.constant 0 : i32
    %c0_i32_1 = arith.constant 0 : i32
    return %c0_i32, %c0_i32_0 : i32, i32
  }
  func.func @transform_2(%arg0: i32, %arg1: i32) -> (i32, i32, i32, i32) {
    %c0_i32 = arith.constant 0 : i32
    %c0_i32_0 = arith.constant 0 : i32
    %c0_i32_1 = arith.constant 0 : i32
    return %arg0, %arg1, %c0_i32, %c0_i32_0 : i32, i32, i32, i32
  }
}

</mosaic_0001>

<llo_original>
// kernel: tpu_custom_call.1
$region0: #{tpu_custom_call.1}
  #allocation0 [shape = 'u32[]', space=smem, size = 0x4, offset = 0x4, fixed_abs, tag = 'smem constant byte address 0x4 - core index']
  #allocation1 [shape = 'u32[144,128]{1,0:T(1,128)}', space=vmem, size = 0x12000, scoped, tag = 'internal scratch']
  %s0 = inlined_call_operand.vmem [shape: f32[2,4,256], index: 0, kind: input, shape index: {}]
  %s1 = inlined_call_operand.vmem [shape: f32[32,4], index: 1, kind: input, shape index: {}]
  %s2 = inlined_call_operand.vmem [shape: f32[2,1,32,2], index: 2, kind: output, shape index: {}]
  %s3 = sld [smem:[#allocation0]]
  $region41: #{tpu_custom_call.1} parent=0
    _
  %s5 = ssub.s32 1, %s3
  %s6 = scalar_select 0, %s5, %s3
  loop: start=0, step=1, limit=4
  $region2: #{tpu_custom_call.1} parent=0 // loop_pre_header
    _
  $region3: #{tpu_custom_call.1} parent=0 // loop_header
    %s8 = sphi 0, %s12
    %p9 = scmp.ge.s32.totalorder %s8, 4
    %s15 = sphi 0, %s27
    %s16 = sphi 0, %s23
    %s17 = sphi 0, %s15
    %s18 = sphi 0, %s16
    %s19 = sphi 0, %s17
    %s20 = sphi 0, %s18
    %s32 = sphi 0, %s34
    %s35 = sphi 0, %s32
    %s36 = sphi 0, %s35
    %s52 = sphi 0, %s36
    %s56 = sphi 0, %s56
    %s58 = sphi 0, %s56
    %s59 = sphi 0, %s58
    %s73 = sphi 0, %s59
    %s81 = sphi 0, %s83
    %s84 = sphi 0, %s81
    %s85 = sphi 0, %s84
    %s101 = sphi 0, %s85
  $region4: #{tpu_custom_call.1} parent=0 // loop_header_branch
    %11 = sbr.rel (%p9) target = $region8
  $region5: #{tpu_custom_call.1} parent=0 // loop_body
    %s13 = ssub.s32 %s8, 1
    %s14 = ssub.s32 %s8, 2
    %s21 = sadd.s32 1, %s16
    %p22 = scmp.ge.s32.totalorder %s21, 1
    %s23 = scalar_select %p22, 0, %s21
    %s24 = sadd.s32 1, %s15
    %s25 = scalar_select %p22, %s24, %s15
    %p26 = scmp.ge.s32.totalorder %s25, 2
    %s27 = scalar_select %p26, 0, %s25
    %s28 = ssub.s32 %s15, %s27
    %s29 = ssub.s32 %s16, %s23
    %s30 = sor.u32 %s28, %s29
    %p31 = scmp.eq.s32.totalorder %s30, 0
    %s33 = sadd.s32 %s32, 1
    %s34 = scalar_select %p31, %s32, %s33
    %p37 = pneg %p31
    %p38 = scmp.eq.s32.totalorder %s8, 1
    %p39 = por %p37, %p38
    %p40 = scmp.ne.s32.totalorder %s32, %s35
    %p41 = scmp.eq.s32.totalorder %s8, 0
    %p42 = por %p40, %p41
    %p43 = scmp.ne.s32.totalorder %s32, %s35
    %p44 = scmp.eq.s32.totalorder %s13, 1
    %p45 = por %p43, %p44
    %p46 = scmp.ne.s32.totalorder %s35, %s36
    %p47 = scmp.eq.s32.totalorder %s13, 0
    %p48 = por %p46, %p47
    %p49 = scmp.ne.s32.totalorder %s35, %s36
    %p50 = scmp.eq.s32.totalorder %s14, 1
    %p51 = por %p49, %p50
    %p53 = scmp.ne.s32.totalorder %s36, %s52
    %p54 = scmp.eq.s32.totalorder %s14, 0
    %p55 = por %p53, %p54
    %s57 = sadd.s32 %s56, 1
    %p60 = scmp.eq.s32.totalorder %s8, 1
    %p61 = scmp.ne.s32.totalorder %s56, %s58
    %p62 = scmp.eq.s32.totalorder %s8, 0
    %p63 = por %p61, %p62
    %p64 = scmp.ne.s32.totalorder %s56, %s58
    %p65 = scmp.eq.s32.totalorder %s13, 1
    %p66 = por %p64, %p65
    %p67 = scmp.ne.s32.totalorder %s58, %s59
    %p68 = scmp.eq.s32.totalorder %s13, 0
    %p69 = por %p67, %p68
    %p70 = scmp.ne.s32.totalorder %s58, %s59
    %p71 = scmp.eq.s32.totalorder %s14, 1
    %p72 = por %p70, %p71
    %p74 = scmp.ne.s32.totalorder %s59, %s73
    %p75 = scmp.eq.s32.totalorder %s14, 0
    %p76 = por %p74, %p75
    %s77 = ssub.s32 %s15, %s27
    %s78 = ssub.s32 %s16, %s23
    %s79 = sor.u32 %s77, %s78
    %p80 = scmp.eq.s32.totalorder %s79, 0
    %s82 = sadd.s32 %s81, 1
    %s83 = scalar_select %p80, %s81, %s82
    %p86 = pneg %p80
    %p87 = scmp.eq.s32.totalorder %s8, 1
    %p88 = por %p86, %p87
    %p89 = scmp.ne.s32.totalorder %s81, %s84
    %p90 = scmp.eq.s32.totalorder %s8, 0
    %p91 = por %p89, %p90
    %p92 = scmp.ne.s32.totalorder %s81, %s84
    %p93 = scmp.eq.s32.totalorder %s13, 1
    %p94 = por %p92, %p93
    %p95 = scmp.ne.s32.totalorder %s84, %s85
    %p96 = scmp.eq.s32.totalorder %s13, 0
    %p97 = por %p95, %p96
    %p98 = scmp.ne.s32.totalorder %s84, %s85
    %p99 = scmp.eq.s32.totalorder %s14, 1
    %p100 = por %p98, %p99
    %p102 = scmp.ne.s32.totalorder %s85, %s101
    %p103 = scmp.eq.s32.totalorder %s14, 0
    %p104 = por %p102, %p103
    %p105 = scmp.le.s32.totalorder 1, %s8
    %p106 = scmp.lt.s32.totalorder %s8, 3
    %p107 = pnand %p105, %p106
    %p108 = pneg %p107
    // Predicated region
    $region9: #{tpu_custom_call.1} parent=5 // pred_check
      _
    $region10: #{tpu_custom_call.1} parent=5 // pred_check_branch
      %110 = sbr.rel (%p107) target = $region12
    $region11: #{tpu_custom_call.1} parent=5 // pred_region
      %s111 = ssub.s32 %s8, 1
      // Predicated region
      $region13: #{tpu_custom_call.1} parent=11 // pred_check
        %p112 = pneg %p69
      $region14: #{tpu_custom_call.1} parent=11 // pred_check_branch
        %114 = sbr.rel (%p112) target = $region16
      $region15: #{tpu_custom_call.1} parent=11 // pred_region
        _
      $region16: #{tpu_custom_call.1} parent=11 // pred_fallthru
        _
    $region12: #{tpu_custom_call.1} parent=5 // pred_fallthru
      _
    %p115 = scmp.lt.s32.totalorder %s8, 2
    // Predicated region
    $region17: #{tpu_custom_call.1} parent=5 // pred_check
      %p116 = pneg %p115
    $region18: #{tpu_custom_call.1} parent=5 // pred_check_branch
      %118 = sbr.rel (%p116) target = $region20
    $region19: #{tpu_custom_call.1} parent=5 // pred_region
      // Predicated region
      $region21: #{tpu_custom_call.1} parent=19 // pred_check
        %p119 = pneg %p42
      $region22: #{tpu_custom_call.1} parent=19 // pred_check_branch
        %121 = sbr.rel (%p119) target = $region24
      $region23: #{tpu_custom_call.1} parent=19 // pred_region
        %s122 = smul.u32 2, %s16
        %p123 = scmp.lt.s32.totalorder %s15, 1
        %s124 = scalar_select %p123, %s15, 1
        %p125 = scmp.lt.s32.totalorder %s122, 1
        %s126 = scalar_select %p125, %s122, 1
        %s127 = smul.addr %s124, 2
        %s128 = sadd.s32 %s126, %s127
        %s129 = smul.addr %s128, 4
        %s130 = scalar_lea.vmem %s0, %s129
        %s131 = smul.u32 2, %s16
      $region24: #{tpu_custom_call.1} parent=19 // pred_fallthru
        _
    $region20: #{tpu_custom_call.1} parent=5 // pred_fallthru
      _
    %p132 = scmp.le.s32.totalorder 1, %s8
    %p133 = scmp.lt.s32.totalorder %s8, 3
    %p134 = pnand %p132, %p133
    %p135 = pneg %p134
    // Predicated region
    $region25: #{tpu_custom_call.1} parent=5 // pred_check
      _
    $region26: #{tpu_custom_call.1} parent=5 // pred_check_branch
      %137 = sbr.rel (%p134) target = $region28
    $region27: #{tpu_custom_call.1} parent=5 // pred_region
      %s138 = ssub.s32 %s8, 1
      %s139 = smul.u32 2, %s18
      %p140 = scmp.lt.s32.totalorder %s17, 1
      %s141 = scalar_select %p140, %s17, 1
      %p142 = scmp.lt.s32.totalorder %s139, 1
      %s143 = scalar_select %p142, %s139, 1
      %s144 = smul.addr %s141, 2
      %s145 = sadd.s32 %s143, %s144
      %s146 = smul.addr %s145, 4
      %s147 = scalar_lea.vmem %s0, %s146
      %p148 = pneg %p48
      %p149 = pneg %p45
      %p150 = pneg %p69
      %p151 = pneg %p66
      %p152 = pneg %p97
      %p153 = pneg %p94
      %p154 = scmp.lt.s32.totalorder %s17, 1
      %s155 = scalar_select %p154, %s17, 1
      %p156 = scmp.lt.s32.totalorder %s18, 0
      %s157 = scalar_select %p156, %s18, 0
      %s158 = smul.addr %s157, 4
      %s159 = smul.addr %s155, 4
      %s160 = sadd.s32 %s158, %s159
      %s161 = smul.addr %s160, 8
      %s162 = scalar_lea.vmem %s2, %s161
      %s163 = smul.u32 2, %s18
      %p164 = scmp.lt.s32.totalorder %s17, 1
      %s165 = scalar_select %p164, %s17, 1
      %p166 = scmp.lt.s32.totalorder %s163, 1
      %s167 = scalar_select %p166, %s163, 1
      %s168 = smul.addr %s165, 2
      %s169 = sadd.s32 %s167, %s168
      %s170 = smul.addr %s169, 4
      %s171 = scalar_lea.vmem %s0, %s170
      %s172 = smul.u32 2, %s18
      %p173 = scmp.lt.s32.totalorder %s17, 1
      %s174 = scalar_select %p173, %s17, 1
      %p175 = scmp.lt.s32.totalorder %s18, 0
      %s176 = scalar_select %p175, %s18, 0
      %s177 = smul.addr %s176, 4
      %s178 = smul.addr %s174, 4
      %s179 = sadd.s32 %s177, %s178
      %s180 = smul.addr %s179, 8
      %s181 = scalar_lea.vmem %s2, %s180
      %v182 = vld [vmem:[%s1] sm:$0xff]
      %v183 = vld [vmem:[%s1 + $0x8] sm:$0xff]
      %v184 = vld [vmem:[%s1 + $0x10] sm:$0xff]
      %v185 = vld [vmem:[%s1 + $0x18] sm:$0xff]
      %v186 = vld [vmem:[%s171] sm:$0xff]
      %v188 = vcombine.high %v186, %v186
      %vm189 = vcmask 31744
      %v191 = vsel %vm189, %v182, 0
      %v194 = vsel %vm189, %v183, 0
      %v197 = vsel %vm189, %v184, 0
      %v200 = vsel %vm189, %v185, 0
      %vm202 = vcmask 1043456
      %v203 = vsel %vm202, %v186, 0
      %v205 = vsel %vm202, %v188, 0
      %207 = vmatprep.subr.mxu0 %v205
      %208 = vmatpush1.msra.mxu0 %v203
      %209 = vmatprep.subr.mxu0 0.0
      %210 = vmatpush1.msra.mxu0 0.0
      %211 = vmatprep.subr.mxu0 0.0
      %212 = vmatpush1.msra.mxu0 0.0
      %213 = vmatprep.subr.mxu0 0.0
      %214 = vmatpush1.msra.mxu0 0.0
      %215 = vmatprep.subr.mxu0 0.0
      %216 = vmatpush1.msra.mxu0 0.0
      %217 = vmatprep.subr.mxu0 0.0
      %218 = vmatpush1.msra.mxu0 0.0
      %219 = vmatprep.subr.mxu0 0.0
      %220 = vmatpush1.msra.mxu0 0.0
      %221 = vmatprep.subr.mxu0 0.0
      %222 = vmatpush1.msra.mxu0 0.0
      %223 = vmatprep.subr.mxu0 0.0
      %224 = vmatpush1.msra.mxu0 0.0
      %225 = vmatprep.subr.mxu0 0.0
      %226 = vmatpush1.msra.mxu0 0.0
      %227 = vmatprep.subr.mxu0 0.0
      %228 = vmatpush1.msra.mxu0 0.0
      %229 = vmatprep.subr.mxu0 0.0
      %230 = vmatpush1.msra.mxu0 0.0
      %231 = vmatprep.subr.mxu0 0.0
      %232 = vmatpush1.msra.mxu0 0.0
      %233 = vmatprep.subr.mxu0 0.0
      %234 = vmatpush1.msra.mxu0 0.0
      %235 = vmatprep.subr.mxu0 0.0
      %236 = vmatpush1.msra.mxu0 0.0
      %237 = vmatprep.subr.mxu0 0.0
      %238 = vmatpush1.msra.mxu0 0.0
      %239 = vmatprep.subr.mxu0 0.0
      %240 = vmatpush1.msra.mxu0 0.0
      %241 = vmatprep.subr.mxu0 0.0
      %242 = vmatpush1.msra.mxu0 0.0
      %243 = vmatprep.subr.mxu0 0.0
      %244 = vmatpush1.msra.mxu0 0.0
      %245 = vmatprep.subr.mxu0 0.0
      %246 = vmatpush1.msra.mxu0 0.0
      %247 = vmatprep.subr.mxu0 0.0
      %248 = vmatpush1.msra.mxu0 0.0
      %249 = vmatprep.subr.mxu0 0.0
      %250 = vmatpush1.msra.mxu0 0.0
      %251 = vmatprep.subr.mxu0 0.0
      %252 = vmatpush1.msra.mxu0 0.0
      %253 = vmatprep.subr.mxu0 0.0
      %254 = vmatpush1.msra.mxu0 0.0
      %255 = vmatprep.subr.mxu0 0.0
      %256 = vmatpush1.msra.mxu0 0.0
      %257 = vmatprep.subr.mxu0 0.0
      %258 = vmatpush1.msra.mxu0 0.0
      %259 = vmatprep.subr.mxu0 0.0
      %260 = vmatpush1.msra.mxu0 0.0
      %261 = vmatprep.subr.mxu0 0.0
      %262 = vmatpush1.msra.mxu0 0.0
      %263 = vmatprep.subr.mxu0 0.0
      %264 = vmatpush1.msra.mxu0 0.0
      %265 = vmatprep.subr.mxu0 0.0
      %266 = vmatpush1.msra.mxu0 0.0
      %267 = vmatprep.subr.mxu0 0.0
      %268 = vmatpush1.msra.mxu0 0.0
      %269 = vmatprep.subr.mxu0 0.0
      %270 = vmatpush1.msra.mxu0 0.0
      %271 = vmatprep.mubr.f32.mxu0 0.0
      %272 = vmatmul.mubr.f32.gmra.mrb[0].mxu0 %v191
      %v273 = vpop.f32.mrb[0].mxu0
      %v274 = vadd.f32 0.0, %v273
      %v275 = vpop.f32.mrb[0].mxu0
      %v276 = vadd.f32 0.0, %v275
      %277 = vmatprep.mubr.f32.mxu0 0.0
      %278 = vmatmul.mubr.f32.gmra.mrb[0].mxu0 %v194
      %v279 = vpop.f32.mrb[0].mxu0
      %v280 = vadd.f32 0.0, %v279
      %v281 = vpop.f32.mrb[0].mxu0
      %v282 = vadd.f32 0.0, %v281
      %283 = vmatprep.mubr.f32.mxu0 0.0
      %284 = vmatmul.mubr.f32.gmra.mrb[0].mxu0 %v197
      %v285 = vpop.f32.mrb[0].mxu0
      %v286 = vadd.f32 0.0, %v285
      %v287 = vpop.f32.mrb[0].mxu0
      %v288 = vadd.f32 0.0, %v287
      %289 = vmatprep.mubr.f32.mxu0 0.0
      %290 = vmatmul.mubr.f32.gmra.mrb[0].mxu0 %v200
      %v291 = vpop.f32.mrb[0].mxu0
      %v292 = vadd.f32 0.0, %v291
      %v293 = vpop.f32.mrb[0].mxu0
      %v294 = vadd.f32 0.0, %v293
      %295 = vdwg.mxu0
      %v296 = vadd.f32 %v274, %v276
      %297 = vadd.xlane.f32.xlu0 %v296
      %v298 = vpop.xlane.xlu0 %297
      %v299 = vadd.f32 %v280, %v282
      %300 = vadd.xlane.f32.xlu0 %v299
      %v301 = vpop.xlane.xlu0 %300
      %v302 = vadd.f32 %v286, %v288
      %303 = vadd.xlane.f32.xlu0 %v302
      %v304 = vpop.xlane.xlu0 %303
      %v305 = vadd.f32 %v292, %v294
      %306 = vadd.xlane.f32.xlu0 %v305
      %v307 = vpop.xlane.xlu0 %306
      %v308 = vadd.f32 %v298, 0.0
      %v309 = vadd.f32 %v301, 0.0
      %v310 = vadd.f32 %v304, 0.0
      %v311 = vadd.f32 %v307, 0.0
      %v312 = vmul.f32 %v274, %v274
      %v313 = vmul.f32 %v276, %v276
      %v314 = vmul.f32 %v280, %v280
      %v315 = vmul.f32 %v282, %v282
      %v316 = vmul.f32 %v286, %v286
      %v317 = vmul.f32 %v288, %v288
      %v318 = vmul.f32 %v292, %v292
      %v319 = vmul.f32 %v294, %v294
      %v320 = vadd.f32 %v312, %v313
      %321 = vadd.xlane.f32.xlu0 %v320
      %v322 = vpop.xlane.xlu0 %321
      %v323 = vadd.f32 %v314, %v315
      %324 = vadd.xlane.f32.xlu0 %v323
      %v325 = vpop.xlane.xlu0 %324
      %v326 = vadd.f32 %v316, %v317
      %327 = vadd.xlane.f32.xlu0 %v326
      %v328 = vpop.xlane.xlu0 %327
      %v329 = vadd.f32 %v318, %v319
      %330 = vadd.xlane.f32.xlu0 %v329
      %v331 = vpop.xlane.xlu0 %330
      %v332 = vadd.f32 %v322, 0.0
      %v333 = vadd.f32 %v325, 0.0
      %v334 = vadd.f32 %v328, 0.0
      %v335 = vadd.f32 %v331, 0.0
      %vm336 = vcmask 7168
      %v337 = vsel %vm336, %v308, %v332
      %v338 = vsel %vm336, %v309, %v333
      %v339 = vsel %vm336, %v310, %v334
      %v340 = vsel %vm336, %v311, %v335
      %vm341 = vcmask 15360
      %342 = vst.msk [vmem:[%s181] sm:$0xff] %vm341, %v337
      %343 = vst.msk [vmem:[%s181 + $0x8] sm:$0xff] %vm341, %v338
      %344 = vst.msk [vmem:[%s181 + $0x10] sm:$0xff] %vm341, %v339
      %345 = vst.msk [vmem:[%s181 + $0x18] sm:$0xff] %vm341, %v340
      %p346 = scmp.lt.s32.totalorder %s17, 1
      %s347 = scalar_select %p346, %s17, 1
      %p348 = scmp.lt.s32.totalorder %s18, 0
      %s349 = scalar_select %p348, %s18, 0
      %s350 = smul.addr %s349, 4
      %s351 = smul.addr %s347, 4
      %s352 = sadd.s32 %s350, %s351
      %s353 = smul.addr %s352, 8
      %s354 = scalar_lea.vmem %s2, %s353
      // Predicated region
      $region29: #{tpu_custom_call.1} parent=27 // pred_check
        %p355 = pneg %p94
      $region30: #{tpu_custom_call.1} parent=27 // pred_check_branch
        %357 = sbr.rel (%p355) target = $region32
      $region31: #{tpu_custom_call.1} parent=27 // pred_region
        _
      $region32: #{tpu_custom_call.1} parent=27 // pred_fallthru
        _
    $region28: #{tpu_custom_call.1} parent=5 // pred_fallthru
      _
    %p358 = scmp.le.s32.totalorder 2, %s8
    // Predicated region
    $region33: #{tpu_custom_call.1} parent=5 // pred_check
      %p359 = pneg %p358
    $region34: #{tpu_custom_call.1} parent=5 // pred_check_branch
      %361 = sbr.rel (%p359) target = $region36
    $region35: #{tpu_custom_call.1} parent=5 // pred_region
      %s362 = ssub.s32 %s8, 2
      // Predicated region
      $region37: #{tpu_custom_call.1} parent=35 // pred_check
        %p363 = pneg %p100
      $region38: #{tpu_custom_call.1} parent=35 // pred_check_branch
        %365 = sbr.rel (%p363) target = $region40
      $region39: #{tpu_custom_call.1} parent=35 // pred_region
        %p366 = scmp.lt.s32.totalorder %s19, 1
        %s367 = scalar_select %p366, %s19, 1
        %p368 = scmp.lt.s32.totalorder %s20, 0
        %s369 = scalar_select %p368, %s20, 0
        %s370 = smul.addr %s369, 4
        %s371 = smul.addr %s367, 4
        %s372 = sadd.s32 %s370, %s371
        %s373 = smul.addr %s372, 8
        %s374 = scalar_lea.vmem %s2, %s373
      $region40: #{tpu_custom_call.1} parent=35 // pred_fallthru
        _
    $region36: #{tpu_custom_call.1} parent=5 // pred_fallthru
      _
  $region6: #{tpu_custom_call.1} parent=0 // loop_footer
    %s12 = sadd.s32 1, %s8
  $region7: #{tpu_custom_call.1} parent=0 // loop_footer_branch
    %7 = sbr.rel target = $region3
  $region8: #{tpu_custom_call.1} parent=0 // loop_exit
    _

</llo_original>
